<compile_context>
chip_gen: v5e
topology: v5e:2x2
jax: 0.10.0
libtpu: 0.0.40
codegen_flags: <defaults>
</compile_context>

<pallas_src>
import functools
import math

import jax
import jax.numpy as jnp
from jax.experimental import pallas as pl
from jax.experimental.pallas import tpu as pltpu

_LANES = 128
_MAX_DENSE_WIDTH = 512                  # cap on lcm(Cx, 128) dense row width
_TARGET_STEP_BYTES = 6 * 1024 * 1024    # x + out block bytes per step (~2-3 MiB x)
_MIN_STEP_BYTES = 1 * 1024 * 1024       # floor (~512 KiB x block) for step overhead
_MIN_GRID_STEPS = 8                     # >= 4 steps per TensorCore on v7x megacore
_VMEM_LIMIT_BYTES = 32 * 1024 * 1024    # <= half of v7x's 64 MiB physical VMEM


def _round_up(x: int, m: int) -> int:
    return ((x + m - 1) // m) * m


def _sublanes_for(itemsize: int) -> int:
    # f32 -> 8 sublanes, bf16 -> 16, int8/fp8 -> 32 (sub-32-bit sublane packing).
    return max(8, 32 // max(1, itemsize))


def _pick_row_tile(num_rows: int, row_bytes: int, sublanes: int) -> int:
    """Row tile targeting ~2-3 MiB x blocks, >= _MIN_GRID_STEPS grid steps when
    the array allows, and a ~512 KiB-per-x-block floor."""
    if num_rows <= sublanes:
        return num_rows                              # full-extent block, always legal

    def rows_for(nbytes):
        return max(sublanes, (nbytes // max(row_bytes, 1)) // sublanes * sublanes)

    cap = rows_for(_TARGET_STEP_BYTES)
    floor = rows_for(_MIN_STEP_BYTES)                # floor <= cap by construction
    steps_tile = _round_up(pl.cdiv(num_rows, _MIN_GRID_STEPS), sublanes)
    tile = max(min(cap, steps_tile), floor)
    if tile >= num_rows:
        return num_rows                              # one full-extent block
    return tile


def _dense_kernel(x_ref, s_ref, e_ref, o_ref, *, compute_dtype):
    # x_ref: (T, W) lane-dense view packing R = W // Cx original rows per row
    # s_ref: (T, R) per-original-row scale (y[:, 1], y's native dtype)
    # e_ref: (R, W) f32 one-hot expansion, e[r, j] = 1 iff j // Cx == r
    # o_ref: (T, W)
    # Expand the scale to full lane width on the otherwise-idle MXU so the VPU
    # multiply and the stores are full-width / unmasked.  The one-hot f32 dot
    # reproduced y[:, 1] to <1e-6 in testing; set precision=HIGHEST on the dot
    # if bit-exact parity with `x * y[:, 1:2]` is ever required.
    scale = jnp.dot(s_ref[...].astype(jnp.float32), e_ref[...],
                    preferred_element_type=jnp.float32)
    o_ref[...] = (x_ref[...].astype(compute_dtype)
                  * scale.astype(compute_dtype)).astype(o_ref.dtype)


def _generic_kernel(x_ref, s_ref, o_ref, *, compute_dtype):
    # x_ref: (T, Cx), s_ref: (T, 1) -> broadcast multiply over channels.
    o_ref[...] = (x_ref[...].astype(compute_dtype)
                  * s_ref[...].astype(compute_dtype)).astype(o_ref.dtype)


def multiply_features(x_feats: jnp.ndarray, y_feats: jnp.ndarray) -> jnp.ndarray:
    N, Cx = x_feats.shape
    Ny, Cy = y_feats.shape
    if N != Ny:
        raise ValueError("x and y must have the same number of active sites "
                         "(rows are index-aligned in mlreco Multiply)")
    if Cy < 2:
        raise ValueError("y.features must have at least 2 channels")

    # Match x * y[:, 1][:, None] type promotion; integer inputs round-trip f32.
    out_dtype = jnp.result_type(x_feats.dtype, y_feats.dtype)
    compute_dtype = out_dtype if jnp.issubdtype(out_dtype, jnp.floating) else jnp.float32

    # Only channel 1 of y is used; slice it in y's native dtype (no wrapper cast).
    # TODO(synk): for tiny Cy the slice could be folded into the kernel itself.
    scale = y_feats[:, 1]

    x_itemsize = jnp.dtype(x_feats.dtype).itemsize
    out_itemsize = jnp.dtype(out_dtype).itemsize
    sublanes = _sublanes_for(min(x_itemsize, out_itemsize))
    cparams = pltpu.CompilerParams(dimension_semantics=("parallel",),
                                   vmem_limit_bytes=_VMEM_LIMIT_BYTES)

    W = math.lcm(Cx, _LANES)
    R = W // Cx
    use_dense = (Cx % _LANES != 0) and (W <= _MAX_DENSE_WIDTH) and (N >= R)

    if use_dense:
        # ---- lane-dense fast path -------------------------------------------
        M = N // R                  # dense rows (each packs R original rows)
        bulk = M * R                # original rows covered lane-dense
        if bulk == N:
            x_bulk, s_bulk = x_feats, scale
        else:
            x_bulk, s_bulk = x_feats[:bulk], scale[:bulk]
        x2 = x_bulk.reshape(M, W)   # free row-major views
        s2 = s_bulk.reshape(M, R)
        lane = jnp.arange(W, dtype=jnp.int32)[None, :]
        expand = (lane // Cx
                  == jnp.arange(R, dtype=jnp.int32)[:, None]).astype(jnp.float32)

        row_bytes = W * (x_itemsize + out_itemsize)
        tile = _pick_row_tile(M, row_bytes, sublanes)
        grid = (pl.cdiv(M, tile),)

        out2 = pl.pallas_call(
            functools.partial(_dense_kernel, compute_dtype=compute_dtype),
            out_shape=jax.ShapeDtypeStruct((M, W), out_dtype),
            grid_spec=pl.GridSpec(
                grid=grid,
                in_specs=[
                    pl.BlockSpec((tile, W), lambda i: (i, 0)),
                    pl.BlockSpec((tile, R), lambda i: (i, 0)),
                    pl.BlockSpec((R, W), lambda i: (0, 0)),   # constant block
                ],
                out_specs=pl.BlockSpec((tile, W), lambda i: (i, 0)),
            ),
            compiler_params=cparams,
        )(x2, s2, expand)
        out_bulk = out2.reshape(bulk, Cx)
        if bulk == N:
            return out_bulk
        # Tiny ragged tail (< R rows): patch with a wrapper-side op so the bulk
        # keeps the lane-dense path.
        tail_out = (x_feats[bulk:].astype(compute_dtype)
                    * scale[bulk:, None].astype(compute_dtype)).astype(out_dtype)
        return jnp.concatenate([out_bulk, tail_out], axis=0)

    # ---- generic fallback (Cx multiple of 128, or lcm(Cx,128) too wide) ------
    s2 = scale[:, None]  # (N, 1), native dtype
    row_bytes = _round_up(Cx, _LANES) * (x_itemsize + out_itemsize)
    tile = _pick_row_tile(N, row_bytes, sublanes)
    grid = (pl.cdiv(N, tile),)

    return pl.pallas_call(
        functools.partial(_generic_kernel, compute_dtype=compute_dtype),
        out_shape=jax.ShapeDtypeStruct((N, Cx), out_dtype),
        grid_spec=pl.GridSpec(
            grid=grid,
            in_specs=[
                pl.BlockSpec((tile, Cx), lambda i: (i, 0)),
                pl.BlockSpec((tile, 1), lambda i: (i, 0)),
            ],
            out_specs=pl.BlockSpec((tile, Cx), lambda i: (i, 0)),
        ),
        compiler_params=cparams,
    )(x_feats, s2)


if __name__ == "__main__":
    key = jax.random.PRNGKey(0)
    kx, ky, k2, k3 = jax.random.split(key, 4)

    # Small shapes consistent with the module: N active sparse sites, channels.
    N, Cx, Cy = 256, 32, 4
    x_features = jax.random.normal(kx, (N, Cx), dtype=jnp.float32)
    y_features = jax.random.normal(ky, (N, Cy), dtype=jnp.float32)
    out = jax.block_until_ready(multiply_features(x_features, y_features))
    ref = x_features * y_features[:, 1][:, None]
    assert out.shape == x_features.shape and out.dtype == x_features.dtype
    assert jnp.allclose(out, ref, atol=1e-6, rtol=1e-6)

    # Lane-dense path with W = lcm(48, 128) = 384 (previously generic fallback).
    ka, kb = jax.random.split(k2)
    x2 = jax.random.normal(ka, (200, 48), dtype=jnp.float32)
    y2 = jax.random.normal(kb, (200, 3), dtype=jnp.float32)
    out2 = jax.block_until_ready(multiply_features(x2, y2))
    assert jnp.allclose(out2, x2 * y2[:, 1][:, None], atol=1e-6, rtol=1e-6)

    # Ragged N: bulk runs lane-dense, 3-row tail patched wrapper-side.
    kc, kd = jax.random.split(k3)
    x3 = jax.random.normal(kc, (203, 32), dtype=jnp.float32)
    y3 = jax.random.normal(kd, (203, 2), dtype=jnp.float32)
    out3 = jax.block_until_ready(multiply_features(x3, y3))
    assert jnp.allclose(out3, x3 * y3[:, 1][:, None], atol=1e-6, rtol=1e-6)

    # Generic fallback (lcm(Cx, 128) too wide).
    ke, kf = jax.random.split(jax.random.PRNGKey(7))
    x4 = jax.random.normal(ke, (60, 5), dtype=jnp.float32)
    y4 = jax.random.normal(kf, (60, 4), dtype=jnp.float32)
    out4 = jax.block_until_ready(multiply_features(x4, y4))
    assert jnp.allclose(out4, x4 * y4[:, 1][:, None], atol=1e-6, rtol=1e-6)

    # bf16-native multiply (no f32 upcast of x inside the kernel).
    x5 = x_features.astype(jnp.bfloat16)
    y5 = y_features.astype(jnp.bfloat16)
    out5 = jax.block_until_ready(multiply_features(x5, y5))
    ref5 = (x5 * y5[:, 1][:, None]).astype(jnp.float32)
    assert out5.dtype == jnp.bfloat16
    assert jnp.allclose(out5.astype(jnp.float32), ref5, atol=1e-2, rtol=1e-2)

    print("KERNEL_OK")
</pallas_src>

<mosaic_0001>
module attributes {stable_mosaic.version = 11 : i64} {
  func.func @_dense_kernel(%arg0: i32, %arg1: memref<64x128xf32, #tpu.memory_space<vmem>>, %arg2: memref<64x4xf32, #tpu.memory_space<vmem>>, %arg3: memref<4x128xf32, #tpu.memory_space<vmem>>, %arg4: memref<64x128xf32, #tpu.memory_space<vmem>>) attributes {dimension_semantics = [#tpu.dimension_semantics<parallel>], iteration_bounds = array<i64: 1>, scalar_prefetch = 0 : i64, scratch_operands = 0 : i64, tpu.core_type = #tpu.core_type<tc>, window_params = [{transform_indices = @transform_0, window_bounds = array<i64: 64, 128>}, {transform_indices = @transform_1, window_bounds = array<i64: 64, 4>}, {pipeline_mode = #tpu.pipeline_mode<synchronous>, transform_indices = @transform_2, window_bounds = array<i64: 4, 128>}, {transform_indices = @transform_3, window_bounds = array<i64: 64, 128>}]} {
    %c0 = arith.constant 0 : index
    %c0_0 = arith.constant 0 : index
    %0 = vector.load %arg2[%c0, %c0_0] : memref<64x4xf32, #tpu.memory_space<vmem>>, vector<64x4xf32>
    %c0_1 = arith.constant 0 : index
    %c0_2 = arith.constant 0 : index
    %1 = vector.load %arg3[%c0_1, %c0_2] : memref<4x128xf32, #tpu.memory_space<vmem>>, vector<4x128xf32>
    %cst = arith.constant dense<0.000000e+00> : vector<64x128xf32>
    %2 = tpu.matmul %0, %1, %cst {dimension_numbers = #tpu.dot_dimension_numbers<[1], [0], [0], [1], [0, 0, 1, 1], [], []>} : vector<64x4xf32>, vector<4x128xf32>, vector<64x128xf32> -> vector<64x128xf32>
    %c0_3 = arith.constant 0 : index
    %c0_4 = arith.constant 0 : index
    %3 = vector.load %arg1[%c0_3, %c0_4] : memref<64x128xf32, #tpu.memory_space<vmem>>, vector<64x128xf32>
    %4 = arith.mulf %3, %2 : vector<64x128xf32>
    %c0_5 = arith.constant 0 : index
    %c0_6 = arith.constant 0 : index
    %5 = vector.load %arg4[%c0_5, %c0_6] : memref<64x128xf32, #tpu.memory_space<vmem>>, vector<64x128xf32>
    tpu.vector_store %arg4[%c0_5, %c0_6], %4 {strides = array<i32>} : memref<64x128xf32, #tpu.memory_space<vmem>>, vector<64x128xf32>,
    return
  }
  func.func @transform_0(%arg0: i32) -> (i32, i32) {
    %c0_i32 = arith.constant 0 : i32
    %c0_i32_0 = arith.constant 0 : i32
    return %arg0, %c0_i32 : i32, i32
  }
  func.func @transform_1(%arg0: i32) -> (i32, i32) {
    %c0_i32 = arith.constant 0 : i32
    %c0_i32_0 = arith.constant 0 : i32
    return %arg0, %c0_i32 : i32, i32
  }
  func.func @transform_2(%arg0: i32) -> (i32, i32) {
    %c0_i32 = arith.constant 0 : i32
    %c0_i32_0 = arith.constant 0 : i32
    %c0_i32_1 = arith.constant 0 : i32
    return %c0_i32, %c0_i32_0 : i32, i32
  }
  func.func @transform_3(%arg0: i32) -> (i32, i32) {
    %c0_i32 = arith.constant 0 : i32
    %c0_i32_0 = arith.constant 0 : i32
    return %arg0, %c0_i32 : i32, i32
  }
}

</mosaic_0001>

<llo_original>
// kernel: tpu_custom_call.1
$region0: #{tpu_custom_call.1}
  #allocation0 [shape = 'u32[]', space=smem, size = 0x4, offset = 0x4, fixed_abs, tag = 'smem constant byte address 0x4 - core index']
  #allocation1 [shape = 'u32[72,128]{1,0:T(1,128)}', space=vmem, size = 0x9000, scoped, tag = 'internal scratch']
  %s0 = inlined_call_operand.vmem [shape: f32[64,128], index: 0, kind: input, shape index: {}]
  %s1 = inlined_call_operand.vmem [shape: f32[64,4], index: 1, kind: input, shape index: {}]
  %s2 = inlined_call_operand.vmem [shape: f32[4,128], index: 2, kind: input, shape index: {}]
  %s3 = inlined_call_operand.hbm [shape: f32[64,128], index: 3, kind: output, shape index: {}]
  %s4 = sld [smem:[#allocation0]]
  $region22: #{tpu_custom_call.1} parent=0
    _
  %s6 = ssub.s32 1, %s4
  %s7 = scalar_select 0, %s6, %s4
  $region1: #{tpu_custom_call.1} parent=0
    #allocation2 [shape = 'u8[32768]{0}', space=vmem, size = 0x8000, scoped, tag = 'output window, operand 0, single buffered']
    #allocation3 [shape = 's32[1]{0}', space=sflag, size = 0x4, scoped, tag = 'scoped memory for tpu_custom_call.1']
    %8 = vsyncpa [#allocation3], 0
    // Predicated region
    $region2: #{tpu_custom_call.1} parent=1 // pred_check
      _
    $region3: #{tpu_custom_call.1} parent=1 // pred_check_branch
      %10 = sbr.rel (0) target = $region5
    $region4: #{tpu_custom_call.1} parent=1 // pred_region
      _
    $region5: #{tpu_custom_call.1} parent=1 // pred_fallthru
      _
    // Predicated region
    $region6: #{tpu_custom_call.1} parent=1 // pred_check
      _
    $region7: #{tpu_custom_call.1} parent=1 // pred_check_branch
      %12 = sbr.rel (0) target = $region9
    $region8: #{tpu_custom_call.1} parent=1 // pred_region
      _
    $region9: #{tpu_custom_call.1} parent=1 // pred_fallthru
      _
    // Predicated region
    $region10: #{tpu_custom_call.1} parent=1 // pred_check
      _
    $region11: #{tpu_custom_call.1} parent=1 // pred_check_branch
      %14 = sbr.rel (0) target = $region13
    $region12: #{tpu_custom_call.1} parent=1 // pred_region
      _
    $region13: #{tpu_custom_call.1} parent=1 // pred_fallthru
      _
    %v15 = vld [vmem:[%s1] sm:$0xff]
    %v16 = vld [vmem:[%s1 + $0x8] sm:$0xff]
    %v17 = vld [vmem:[%s1 + $0x10] sm:$0xff]
    %v18 = vld [vmem:[%s1 + $0x18] sm:$0xff]
    %v19 = vld [vmem:[%s1 + $0x20] sm:$0xff]
    %v20 = vld [vmem:[%s1 + $0x28] sm:$0xff]
    %v21 = vld [vmem:[%s1 + $0x30] sm:$0xff]
    %v22 = vld [vmem:[%s1 + $0x38] sm:$0xff]
    %v23 = vld [vmem:[%s2] sm:$0xf]
    %vm24 = vcmask 31744
    %v26 = vsel %vm24, %v15, 0
    %v29 = vsel %vm24, %v16, 0
    %v32 = vsel %vm24, %v17, 0
    %v35 = vsel %vm24, %v18, 0
    %v38 = vsel %vm24, %v19, 0
    %v41 = vsel %vm24, %v20, 0
    %v44 = vsel %vm24, %v21, 0
    %v47 = vsel %vm24, %v22, 0
    %vm49 = vcmask 1043456
    %v51 = vsel %vm49, %v23, 0
    %53 = vmatpush.msra.mxu0 0.0
    %54 = vmatpush.msra.mxu0 0.0
    %55 = vmatpush.msra.mxu0 0.0
    %56 = vmatpush.msra.mxu0 0.0
    %57 = vmatpush.msra.mxu0 0.0
    %58 = vmatpush.msra.mxu0 0.0
    %59 = vmatpush.msra.mxu0 0.0
    %60 = vmatpush.msra.mxu0 0.0
    %61 = vmatpush.msra.mxu0 0.0
    %62 = vmatpush.msra.mxu0 0.0
    %63 = vmatpush.msra.mxu0 0.0
    %64 = vmatpush.msra.mxu0 0.0
    %65 = vmatpush.msra.mxu0 0.0
    %66 = vmatpush.msra.mxu0 0.0
    %67 = vmatpush.msra.mxu0 0.0
    %68 = vmatpush.msra.mxu0 %v51
    %69 = vmatmul.f32.gmra.mxu0 %v26
    %v70 = vpop.f32.mrf.mxu0
    %v71 = vadd.f32 0.0, %v70
    %72 = vmatmul.f32.gmra.mxu0 %v29
    %v73 = vpop.f32.mrf.mxu0
    %v74 = vadd.f32 0.0, %v73
    %75 = vmatmul.f32.gmra.mxu0 %v32
    %v76 = vpop.f32.mrf.mxu0
    %v77 = vadd.f32 0.0, %v76
    %78 = vmatmul.f32.gmra.mxu0 %v35
    %v79 = vpop.f32.mrf.mxu0
    %v80 = vadd.f32 0.0, %v79
    %81 = vmatmul.f32.gmra.mxu0 %v38
    %v82 = vpop.f32.mrf.mxu0
    %v83 = vadd.f32 0.0, %v82
    %84 = vmatmul.f32.gmra.mxu0 %v41
    %v85 = vpop.f32.mrf.mxu0
    %v86 = vadd.f32 0.0, %v85
    %87 = vmatmul.f32.gmra.mxu0 %v44
    %v88 = vpop.f32.mrf.mxu0
    %v89 = vadd.f32 0.0, %v88
    %90 = vmatmul.f32.gmra.mxu0 %v47
    %v91 = vpop.f32.mrf.mxu0
    %v92 = vadd.f32 0.0, %v91
    %93 = vdwg.mxu0
    %v94 = vld [vmem:[%s0] sm:$0xff]
    %v95 = vld [vmem:[%s0 + $0x8] sm:$0xff]
    %v96 = vld [vmem:[%s0 + $0x10] sm:$0xff]
    %v97 = vld [vmem:[%s0 + $0x18] sm:$0xff]
    %v98 = vld [vmem:[%s0 + $0x20] sm:$0xff]
    %v99 = vld [vmem:[%s0 + $0x28] sm:$0xff]
    %v100 = vld [vmem:[%s0 + $0x30] sm:$0xff]
    %v101 = vld [vmem:[%s0 + $0x38] sm:$0xff]
    %v102 = vmul.f32 %v94, %v71
    %v103 = vmul.f32 %v95, %v74
    %v104 = vmul.f32 %v96, %v77
    %v105 = vmul.f32 %v97, %v80
    %v106 = vmul.f32 %v98, %v83
    %v107 = vmul.f32 %v99, %v86
    %v108 = vmul.f32 %v100, %v89
    %v109 = vmul.f32 %v101, %v92
    %110 = vst [vmem:[#allocation2] sm:$0xff] %v102
    %111 = vst [vmem:[#allocation2 + $0x8] sm:$0xff] %v103
    %112 = vst [vmem:[#allocation2 + $0x10] sm:$0xff] %v104
    %113 = vst [vmem:[#allocation2 + $0x18] sm:$0xff] %v105
    %114 = vst [vmem:[#allocation2 + $0x20] sm:$0xff] %v106
    %115 = vst [vmem:[#allocation2 + $0x28] sm:$0xff] %v107
    %116 = vst [vmem:[#allocation2 + $0x30] sm:$0xff] %v108
    %117 = vst [vmem:[#allocation2 + $0x38] sm:$0xff] %v109
    // Predicated region
    $region14: #{tpu_custom_call.1} parent=1 // pred_check
      _
    $region15: #{tpu_custom_call.1} parent=1 // pred_check_branch
      %119 = sbr.rel (0) target = $region17
    $region16: #{tpu_custom_call.1} parent=1 // pred_region
      %121 = vsyncadd [#allocation3], 0
      %s122 = sshll.u32 [#allocation2], 4
      %s123 = int_to_ptr.vmem [resolvable:$true] %s122
      %s124 = sshll.u32 %s3, 4
      %s125 = int_to_ptr.hbm [resolvable:$true] %s124
      %130 = dma.vmem_to_hbm [thread:$0]  %s123, 1024, %s125, [#allocation3], 128, 128, 8
    $region17: #{tpu_custom_call.1} parent=1 // pred_fallthru
      _
    // Predicated region
    $region18: #{tpu_custom_call.1} parent=1 // pred_check
      _
    $region19: #{tpu_custom_call.1} parent=1 // pred_check_branch
      %132 = sbr.rel (0) target = $region21
    $region20: #{tpu_custom_call.1} parent=1 // pred_region
      %134 = dma.done [#allocation3], 1024
    $region21: #{tpu_custom_call.1} parent=1 // pred_fallthru
      _
    %135 = vsyncpa [#allocation3], 1

</llo_original>
